<compile_context>
chip_gen: v5e
topology: v5e:2x2
jax: 0.10.0
libtpu: 0.0.40
codegen_flags: <defaults>
</compile_context>

<pallas_src>
import math

import jax
import jax.numpy as jnp
from jax.experimental import pallas as pl
from jax.experimental.pallas import tpu as pltpu


def _round_up(x, m):
    return ((x + m - 1) // m) * m


def attention_gru_kernel(x_ref, h_ref, g_ref,
                         wx_ref, wh_ref,
                         bu_ref, boi_ref, bos_ref,
                         out_ref):
    Hp = out_ref.shape[-1]            # padded hidden width (multiple of 128)

    h = h_ref[...]                    # (bm, Hp)  f32
    g = g_ref[...]                    # (bm, 1)   f32

    # Two fused MXU matmuls: bf16 operands, f32 accumulation.
    # Columns [0:Hp] -> update gate, [Hp:2Hp] -> candidate state.
    px = jnp.dot(x_ref[...], wx_ref[...],
                 preferred_element_type=jnp.float32)                 # (bm, 2Hp)
    ph = jnp.dot(h.astype(jnp.bfloat16), wh_ref[...],
                 preferred_element_type=jnp.float32)                 # (bm, 2Hp)

    # Biases added to the sliced halves (bui+bus were folded into bu in the
    # wrapper) -> saves one full (bm, 2Hp) broadcast-add per grid step.
    update = jax.nn.sigmoid(px[:, :Hp] + ph[:, :Hp] + bu_ref[...])
    cand = jnp.tanh(px[:, Hp:] + boi_ref[...]
                    + update * (ph[:, Hp:] + bos_ref[...]))

    # g * cand + (1 - g) * h  ==  h + g * (cand - h)
    out_ref[...] = (h + g * (cand - h)).astype(out_ref.dtype)


def _choose_bm(B, bm):
    # Halve bm until the padded batch gives >= 2 grid steps (so v7x's two
    # TensorCores both get work), but never below the 8-row sublane minimum.
    while bm > 8 and _round_up(B, bm) // bm < 2:
        bm //= 2
    return bm


def attention_gru_cell(x, h, gate, params, *, bm=256):
    """x: (B, D), h: (B, H), gate: (B, 1) -> (B, H)."""
    B, D = x.shape
    H = h.shape[1]
    assert h.shape[0] == B and gate.shape == (B, 1)
    (wui, bui, wus, bus, woi, boi, wos, bos) = params

    bm = _choose_bm(B, bm)
    Hp = _round_up(H, 128)            # lane-dense hidden/output width
    Bp = _round_up(B, bm)             # batch padded to a whole number of tiles

    f32 = jnp.float32

    def pad_w(w, rows, cols):
        w = w.astype(f32)
        return jnp.pad(w, ((0, rows - w.shape[0]), (0, cols - w.shape[1])))

    def pad_b(b):
        b = b.reshape(1, -1).astype(f32)
        return jnp.pad(b, ((0, 0), (0, Hp - b.shape[1])))

    # Fuse the four linears into two along the output (N) dimension:
    #   [update | candidate].  Weights go to bf16 for the MXU.
    wx = jnp.concatenate([pad_w(wui, D, Hp), pad_w(woi, D, Hp)],
                         axis=1).astype(jnp.bfloat16)        # (D, 2Hp)
    wh = jnp.concatenate([pad_w(wus, Hp, Hp), pad_w(wos, Hp, Hp)],
                         axis=1).astype(jnp.bfloat16)        # (Hp, 2Hp)
    b_u = pad_b(bui) + pad_b(bus)                            # (1, Hp) f32
    b_oi = pad_b(boi)                                        # (1, Hp) f32
    b_os = pad_b(bos)                                        # (1, Hp) f32

    # Pad activations. x only feeds the MXU, so ship it as bf16; h stays f32
    # because the gated mix needs full-precision h.
    xp = jnp.pad(x, ((0, Bp - B), (0, 0))).astype(jnp.bfloat16)
    hp = jnp.pad(h, ((0, Bp - B), (0, Hp - H))).astype(f32)
    gp = jnp.pad(gate, ((0, Bp - B), (0, 0))).astype(f32)

    # Row-tiled activations; grid-constant weights/biases (single-buffered —
    # their block never changes across the batch grid).
    row_x = pl.BlockSpec((bm, D), lambda i: (i, 0))
    row_h = pl.BlockSpec((bm, Hp), lambda i: (i, 0))
    row_g = pl.BlockSpec((bm, 1), lambda i: (i, 0))
    rep = lambda shape: pl.BlockSpec(shape, lambda i: (0, 0),
                                     pipeline_mode=pl.Buffered(1))

    # Explicit VMEM budget: 1x weights/biases (single-buffered) + 2x
    # double-buffered activation tiles + slack, clamped to [16 MiB, 56 MiB]
    # (v7x physical VMEM is 64 MiB; v5e's default scoped limit is only 16 MiB).
    d_lanes = _round_up(D, 128)
    w_bytes = (D * 2 * Hp + Hp * 2 * Hp) * 2                  # bf16, 1 buffer
    b_bytes = 3 * 8 * Hp * 4                                  # f32, 1 buffer
    act_bytes = 2 * (bm * d_lanes * 2                         # x tile (bf16)
                     + bm * Hp * 4                            # h tile (f32)
                     + bm * 128 * 4                           # g tile (f32)
                     + bm * Hp * 4)                           # out tile (f32)
    vmem_limit = int(1.25 * (w_bytes + b_bytes + act_bytes)) + (2 << 20)
    vmem_limit = max(min(vmem_limit, 56 << 20), 16 << 20)

    out = pl.pallas_call(
        attention_gru_kernel,
        out_shape=jax.ShapeDtypeStruct((Bp, Hp), f32),
        grid_spec=pltpu.PrefetchScalarGridSpec(
            num_scalar_prefetch=0,
            grid=(Bp // bm,),
            in_specs=[row_x, row_h, row_g,
                      rep((D, 2 * Hp)), rep((Hp, 2 * Hp)),
                      rep((1, Hp)), rep((1, Hp)), rep((1, Hp))],
            out_specs=row_h,
        ),
        compiler_params=pltpu.CompilerParams(
            dimension_semantics=("parallel",),
            vmem_limit_bytes=vmem_limit),
    )(xp, hp, gp, wx, wh, b_u, b_oi, b_os)

    return out[:B, :H]


def init_linear(key, in_features, out_features):
    """torch.nn.Linear-style init; returns (W^T, b) with W^T (in, out), b (1, out)."""
    kw, kb = jax.random.split(key)
    bound = 1.0 / math.sqrt(in_features)
    w_t = jax.random.uniform(kw, (in_features, out_features),
                             minval=-bound, maxval=bound, dtype=jnp.float32)
    b = jax.random.uniform(kb, (1, out_features),
                           minval=-bound, maxval=bound, dtype=jnp.float32)
    return w_t, b


def reference(x, h, gate, params, dot_dtype=None):
    """Pure-JAX reference. dot_dtype=bf16 mimics the kernel's MXU input cast."""
    (wui, bui, wus, bus, woi, boi, wos, bos) = params
    if dot_dtype is None:
        dot = lambda a, w: jnp.dot(a, w, preferred_element_type=jnp.float32)
    else:
        dot = lambda a, w: jnp.dot(a.astype(dot_dtype), w.astype(dot_dtype),
                                   preferred_element_type=jnp.float32)
    update = jax.nn.sigmoid(dot(x, wui) + bui + dot(h, wus) + bus)
    next_state = jnp.tanh(dot(x, woi) + boi + update * (dot(h, wos) + bos))
    return gate * next_state + (1.0 - gate) * h


if __name__ == "__main__":
    # B=200 pads to 256 and (after the >=2-grid-step shrink, bm 256 -> 128)
    # yields two parallel grid steps; H=32 exercises lane padding to 128.
    B, D, H = 200, 48, 32

    root = jax.random.PRNGKey(0)
    k_x, k_h, k_g, k_ui, k_us, k_oi, k_os = jax.random.split(root, 7)

    x = jax.random.normal(k_x, (B, D), dtype=jnp.float32)
    h = jax.random.normal(k_h, (B, H), dtype=jnp.float32)
    gate = jax.random.uniform(k_g, (B, 1), dtype=jnp.float32)

    wui, bui = init_linear(k_ui, D, H)   # update_gate_input
    wus, bus = init_linear(k_us, H, H)   # update_gate_state
    woi, boi = init_linear(k_oi, D, H)   # output_gate_input
    wos, bos = init_linear(k_os, H, H)   # output_gate_state
    params = (wui, bui, wus, bus, woi, boi, wos, bos)

    out = jax.block_until_ready(attention_gru_cell(x, h, gate, params))
    assert out.shape == (B, H)

    # Tight check against a reference that uses the same bf16 MXU-input cast.
    ref_bf16 = reference(x, h, gate, params, dot_dtype=jnp.bfloat16)
    assert jnp.allclose(out, ref_bf16, atol=1e-3, rtol=1e-3), (
        f"bf16-ref max err {jnp.max(jnp.abs(out - ref_bf16))}")

    # Loose check against the full-f32 reference (bf16 MXU inputs loosen tol).
    ref_f32 = reference(x, h, gate, params)
    assert jnp.allclose(out, ref_f32, atol=3e-2, rtol=3e-2), (
        f"f32-ref max err {jnp.max(jnp.abs(out - ref_f32))}")

    print("KERNEL_OK")
</pallas_src>

<mosaic_0001>
module attributes {stable_mosaic.version = 11 : i64} {
  func.func @attention_gru_kernel(%arg0: i32, %arg1: memref<128x48xbf16, #tpu.memory_space<vmem>>, %arg2: memref<128x128xf32, #tpu.memory_space<vmem>>, %arg3: memref<128x1xf32, #tpu.memory_space<vmem>>, %arg4: memref<48x256xbf16, #tpu.memory_space<vmem>>, %arg5: memref<128x256xbf16, #tpu.memory_space<vmem>>, %arg6: memref<1x128xf32, #tpu.memory_space<vmem>>, %arg7: memref<1x128xf32, #tpu.memory_space<vmem>>, %arg8: memref<1x128xf32, #tpu.memory_space<vmem>>, %arg9: memref<128x128xf32, #tpu.memory_space<vmem>>) attributes {dimension_semantics = [#tpu.dimension_semantics<parallel>], iteration_bounds = array<i64: 2>, scalar_prefetch = 0 : i64, scratch_operands = 0 : i64, tpu.core_type = #tpu.core_type<tc>, window_params = [{transform_indices = @transform_0, window_bounds = array<i64: 128, 48>}, {transform_indices = @transform_1, window_bounds = array<i64: 128, 128>}, {transform_indices = @transform_2, window_bounds = array<i64: 128, 1>}, {pipeline_mode = #tpu.pipeline_mode<synchronous>, transform_indices = @transform_3, window_bounds = array<i64: 48, 256>}, {pipeline_mode = #tpu.pipeline_mode<synchronous>, transform_indices = @transform_4, window_bounds = array<i64: 128, 256>}, {pipeline_mode = #tpu.pipeline_mode<synchronous>, transform_indices = @transform_5, window_bounds = array<i64: 1, 128>}, {pipeline_mode = #tpu.pipeline_mode<synchronous>, transform_indices = @transform_6, window_bounds = array<i64: 1, 128>}, {pipeline_mode = #tpu.pipeline_mode<synchronous>, transform_indices = @transform_7, window_bounds = array<i64: 1, 128>}, {transform_indices = @transform_8, window_bounds = array<i64: 128, 128>}]} {
    %c0 = arith.constant 0 : index
    %c0_0 = arith.constant 0 : index
    %0 = vector.load %arg2[%c0, %c0_0] : memref<128x128xf32, #tpu.memory_space<vmem>>, vector<128x128xf32>
    %c0_1 = arith.constant 0 : index
    %c0_2 = arith.constant 0 : index
    %1 = vector.load %arg3[%c0_1, %c0_2] : memref<128x1xf32, #tpu.memory_space<vmem>>, vector<128x1xf32>
    %c0_3 = arith.constant 0 : index
    %c0_4 = arith.constant 0 : index
    %2 = vector.load %arg1[%c0_3, %c0_4] : memref<128x48xbf16, #tpu.memory_space<vmem>>, vector<128x48xbf16>
    %c0_5 = arith.constant 0 : index
    %c0_6 = arith.constant 0 : index
    %3 = vector.load %arg4[%c0_5, %c0_6] : memref<48x256xbf16, #tpu.memory_space<vmem>>, vector<48x256xbf16>
    %cst = arith.constant dense<0.000000e+00> : vector<128x256xf32>
    %4 = tpu.matmul %2, %3, %cst {dimension_numbers = #tpu.dot_dimension_numbers<[1], [0], [0], [1], [0, 0, 1, 1], [], []>} : vector<128x48xbf16>, vector<48x256xbf16>, vector<128x256xf32> -> vector<128x256xf32>
    %5 = arith.truncf %0 : vector<128x128xf32> to vector<128x128xbf16>
    %c0_7 = arith.constant 0 : index
    %c0_8 = arith.constant 0 : index
    %6 = vector.load %arg5[%c0_7, %c0_8] : memref<128x256xbf16, #tpu.memory_space<vmem>>, vector<128x256xbf16>
    %cst_9 = arith.constant dense<0.000000e+00> : vector<128x256xf32>
    %7 = tpu.matmul %5, %6, %cst_9 {dimension_numbers = #tpu.dot_dimension_numbers<[1], [0], [0], [1], [0, 0, 1, 1], [], []>} : vector<128x128xbf16>, vector<128x256xbf16>, vector<128x256xf32> -> vector<128x256xf32>
    %8 = vector.extract_strided_slice %4 {offsets = [0, 0], sizes = [128, 128], strides = [1, 1]} : vector<128x256xf32> to vector<128x128xf32>
    %9 = vector.extract_strided_slice %7 {offsets = [0, 0], sizes = [128, 128], strides = [1, 1]} : vector<128x256xf32> to vector<128x128xf32>
    %10 = arith.addf %8, %9 : vector<128x128xf32>
    %c0_10 = arith.constant 0 : index
    %c0_11 = arith.constant 0 : index
    %11 = vector.load %arg6[%c0_10, %c0_11] : memref<1x128xf32, #tpu.memory_space<vmem>>, vector<1x128xf32>
    %12 = vector.broadcast %11 : vector<1x128xf32> to vector<128x128xf32>
    %13 = arith.addf %10, %12 : vector<128x128xf32>
    %14 = arith.negf %13 : vector<128x128xf32>
    %15 = math.exp %14 : vector<128x128xf32>
    %cst_12 = arith.constant 1.000000e+00 : f32
    %16 = vector.broadcast %cst_12 : f32 to vector<128x128xf32>
    %17 = arith.addf %16, %15 : vector<128x128xf32>
    %18 = arith.divf %16, %17 : vector<128x128xf32>
    %19 = vector.extract_strided_slice %4 {offsets = [0, 128], sizes = [128, 128], strides = [1, 1]} : vector<128x256xf32> to vector<128x128xf32>
    %c0_13 = arith.constant 0 : index
    %c0_14 = arith.constant 0 : index
    %20 = vector.load %arg7[%c0_13, %c0_14] : memref<1x128xf32, #tpu.memory_space<vmem>>, vector<1x128xf32>
    %21 = vector.broadcast %20 : vector<1x128xf32> to vector<128x128xf32>
    %22 = arith.addf %19, %21 : vector<128x128xf32>
    %23 = vector.extract_strided_slice %7 {offsets = [0, 128], sizes = [128, 128], strides = [1, 1]} : vector<128x256xf32> to vector<128x128xf32>
    %c0_15 = arith.constant 0 : index
    %c0_16 = arith.constant 0 : index
    %24 = vector.load %arg8[%c0_15, %c0_16] : memref<1x128xf32, #tpu.memory_space<vmem>>, vector<1x128xf32>
    %25 = vector.broadcast %24 : vector<1x128xf32> to vector<128x128xf32>
    %26 = arith.addf %23, %25 : vector<128x128xf32>
    %27 = arith.mulf %18, %26 : vector<128x128xf32>
    %28 = arith.addf %22, %27 : vector<128x128xf32>
    %29 = math.tanh %28 : vector<128x128xf32>
    %30 = arith.subf %29, %0 : vector<128x128xf32>
    %31 = vector.broadcast %1 : vector<128x1xf32> to vector<128x128xf32>
    %32 = arith.mulf %31, %30 : vector<128x128xf32>
    %33 = arith.addf %0, %32 : vector<128x128xf32>
    %c0_17 = arith.constant 0 : index
    %c0_18 = arith.constant 0 : index
    %34 = vector.load %arg9[%c0_17, %c0_18] : memref<128x128xf32, #tpu.memory_space<vmem>>, vector<128x128xf32>
    tpu.vector_store %arg9[%c0_17, %c0_18], %33 {strides = array<i32>} : memref<128x128xf32, #tpu.memory_space<vmem>>, vector<128x128xf32>,
    return
  }
  func.func @transform_0(%arg0: i32) -> (i32, i32) {
    %c0_i32 = arith.constant 0 : i32
    %c0_i32_0 = arith.constant 0 : i32
    return %arg0, %c0_i32 : i32, i32
  }
  func.func @transform_1(%arg0: i32) -> (i32, i32) {
    %c0_i32 = arith.constant 0 : i32
    %c0_i32_0 = arith.constant 0 : i32
    return %arg0, %c0_i32 : i32, i32
  }
  func.func @transform_2(%arg0: i32) -> (i32, i32) {
    %c0_i32 = arith.constant 0 : i32
    %c0_i32_0 = arith.constant 0 : i32
    return %arg0, %c0_i32 : i32, i32
  }
  func.func @transform_3(%arg0: i32) -> (i32, i32) {
    %c0_i32 = arith.constant 0 : i32
    %c0_i32_0 = arith.constant 0 : i32
    %c0_i32_1 = arith.constant 0 : i32
    return %c0_i32, %c0_i32_0 : i32, i32
  }
  func.func @transform_4(%arg0: i32) -> (i32, i32) {
    %c0_i32 = arith.constant 0 : i32
    %c0_i32_0 = arith.constant 0 : i32
    %c0_i32_1 = arith.constant 0 : i32
    return %c0_i32, %c0_i32_0 : i32, i32
  }
  func.func @transform_5(%arg0: i32) -> (i32, i32) {
    %c0_i32 = arith.constant 0 : i32
    %c0_i32_0 = arith.constant 0 : i32
    %c0_i32_1 = arith.constant 0 : i32
    return %c0_i32, %c0_i32_0 : i32, i32
  }
  func.func @transform_6(%arg0: i32) -> (i32, i32) {
    %c0_i32 = arith.constant 0 : i32
    %c0_i32_0 = arith.constant 0 : i32
    %c0_i32_1 = arith.constant 0 : i32
    return %c0_i32, %c0_i32_0 : i32, i32
  }
  func.func @transform_7(%arg0: i32) -> (i32, i32) {
    %c0_i32 = arith.constant 0 : i32
    %c0_i32_0 = arith.constant 0 : i32
    %c0_i32_1 = arith.constant 0 : i32
    return %c0_i32, %c0_i32_0 : i32, i32
  }
  func.func @transform_8(%arg0: i32) -> (i32, i32) {
    %c0_i32 = arith.constant 0 : i32
    %c0_i32_0 = arith.constant 0 : i32
    return %arg0, %c0_i32 : i32, i32
  }
}

</mosaic_0001>

<llo_original>
// kernel: tpu_custom_call.1
$region0: #{tpu_custom_call.1}
  #allocation0 [shape = 'u32[]', space=smem, size = 0x4, offset = 0x4, fixed_abs, tag = 'smem constant byte address 0x4 - core index']
  #allocation1 [shape = 'u32[72,128]{1,0:T(1,128)}', space=vmem, size = 0x9000, scoped, tag = 'internal scratch']
  %s0 = inlined_call_operand.vmem [shape: bf16[256,48], index: 0, kind: input, shape index: {}]
  %s1 = inlined_call_operand.vmem [shape: f32[256,128], index: 1, kind: input, shape index: {}]
  %s2 = inlined_call_operand.vmem [shape: f32[256,1], index: 2, kind: input, shape index: {}]
  %s3 = inlined_call_operand.vmem [shape: bf16[48,256], index: 3, kind: input, shape index: {}]
  %s4 = inlined_call_operand.vmem [shape: bf16[128,256], index: 4, kind: input, shape index: {}]
  %s5 = inlined_call_operand.vmem [shape: f32[1,128], index: 5, kind: input, shape index: {}]
  %s6 = inlined_call_operand.vmem [shape: f32[1,128], index: 6, kind: input, shape index: {}]
  %s7 = inlined_call_operand.vmem [shape: f32[1,128], index: 7, kind: input, shape index: {}]
  %s8 = inlined_call_operand.hbm [shape: f32[256,128], index: 8, kind: output, shape index: {}]
  %s9 = sld [smem:[#allocation0]]
  $region65: #{tpu_custom_call.1} parent=0
    _
  %s11 = ssub.s32 1, %s9
  %s12 = scalar_select 0, %s11, %s9
  $region1: #{tpu_custom_call.1} parent=0
    #allocation2 [shape = 'u8[131072]{0}', space=vmem, size = 0x20000, scoped, tag = 'output window, operand 0']
    #allocation3 [shape = 's32[2]{0}', space=sflag, size = 0x8, scoped, tag = 'scoped memory for tpu_custom_call.1']
    %13 = vsyncpa [#allocation3], 0
    %s14 = scalar_lea.sflag [#allocation3], 1
    %15 = vsyncpa %s14, 0
    loop: start=0, step=1, limit=4
    $region2: #{tpu_custom_call.1} parent=1 // loop_pre_header
      _
    $region3: #{tpu_custom_call.1} parent=1 // loop_header
      %s17 = sphi 0, %s21
      %p18 = scmp.ge.s32.totalorder %s17, 4
      %s27 = sphi 0, %s29
      %s30 = sphi 0, %s27
      %s31 = sphi 0, %s30
      %s47 = sphi 0, %s31
      %s53 = sphi 0, %s55
      %s56 = sphi 0, %s53
      %s57 = sphi 0, %s56
      %s73 = sphi 0, %s57
      %s79 = sphi 0, %s81
      %s82 = sphi 0, %s79
      %s83 = sphi 0, %s82
      %s99 = sphi 0, %s83
      %s103 = sphi 0, %s103
      %s105 = sphi 0, %s103
      %s106 = sphi 0, %s105
      %s120 = sphi 0, %s106
      %s124 = sphi 0, %s124
      %s126 = sphi 0, %s124
      %s127 = sphi 0, %s126
      %s141 = sphi 0, %s127
      %s145 = sphi 0, %s145
      %s147 = sphi 0, %s145
      %s148 = sphi 0, %s147
      %s162 = sphi 0, %s148
      %s166 = sphi 0, %s166
      %s168 = sphi 0, %s166
      %s169 = sphi 0, %s168
      %s183 = sphi 0, %s169
      %s187 = sphi 0, %s187
      %s189 = sphi 0, %s187
      %s190 = sphi 0, %s189
      %s204 = sphi 0, %s190
      %s210 = sphi 0, %s212
      %s213 = sphi 0, %s210
      %s214 = sphi 0, %s213
      %s230 = sphi 0, %s214
    $region4: #{tpu_custom_call.1} parent=1 // loop_header_branch
      %20 = sbr.rel (%p18) target = $region8
    $region5: #{tpu_custom_call.1} parent=1 // loop_body
      %s22 = ssub.s32 %s17, 1
      %s23 = ssub.s32 %s17, 2
      %s24 = sadd.s32 %s17, 1
      %s25 = ssub.s32 %s17, %s24
      %p26 = scmp.eq.s32.totalorder %s25, 0
      %s28 = sadd.s32 %s27, 1
      %s29 = scalar_select %p26, %s27, %s28
      %p32 = pneg %p26
      %p33 = scmp.eq.s32.totalorder %s17, 1
      %p34 = por %p32, %p33
      %p35 = scmp.ne.s32.totalorder %s27, %s30
      %p36 = scmp.eq.s32.totalorder %s17, 0
      %p37 = por %p35, %p36
      %p38 = scmp.ne.s32.totalorder %s27, %s30
      %p39 = scmp.eq.s32.totalorder %s22, 1
      %p40 = por %p38, %p39
      %p41 = scmp.ne.s32.totalorder %s30, %s31
      %p42 = scmp.eq.s32.totalorder %s22, 0
      %p43 = por %p41, %p42
      %p44 = scmp.ne.s32.totalorder %s30, %s31
      %p45 = scmp.eq.s32.totalorder %s23, 1
      %p46 = por %p44, %p45
      %p48 = scmp.ne.s32.totalorder %s31, %s47
      %p49 = scmp.eq.s32.totalorder %s23, 0
      %p50 = por %p48, %p49
      %s51 = ssub.s32 %s17, %s24
      %p52 = scmp.eq.s32.totalorder %s51, 0
      %s54 = sadd.s32 %s53, 1
      %s55 = scalar_select %p52, %s53, %s54
      %p58 = pneg %p52
      %p59 = scmp.eq.s32.totalorder %s17, 1
      %p60 = por %p58, %p59
      %p61 = scmp.ne.s32.totalorder %s53, %s56
      %p62 = scmp.eq.s32.totalorder %s17, 0
      %p63 = por %p61, %p62
      %p64 = scmp.ne.s32.totalorder %s53, %s56
      %p65 = scmp.eq.s32.totalorder %s22, 1
      %p66 = por %p64, %p65
      %p67 = scmp.ne.s32.totalorder %s56, %s57
      %p68 = scmp.eq.s32.totalorder %s22, 0
      %p69 = por %p67, %p68
      %p70 = scmp.ne.s32.totalorder %s56, %s57
      %p71 = scmp.eq.s32.totalorder %s23, 1
      %p72 = por %p70, %p71
      %p74 = scmp.ne.s32.totalorder %s57, %s73
      %p75 = scmp.eq.s32.totalorder %s23, 0
      %p76 = por %p74, %p75
      %s77 = ssub.s32 %s17, %s24
      %p78 = scmp.eq.s32.totalorder %s77, 0
      %s80 = sadd.s32 %s79, 1
      %s81 = scalar_select %p78, %s79, %s80
      %p84 = pneg %p78
      %p85 = scmp.eq.s32.totalorder %s17, 1
      %p86 = por %p84, %p85
      %p87 = scmp.ne.s32.totalorder %s79, %s82
      %p88 = scmp.eq.s32.totalorder %s17, 0
      %p89 = por %p87, %p88
      %p90 = scmp.ne.s32.totalorder %s79, %s82
      %p91 = scmp.eq.s32.totalorder %s22, 1
      %p92 = por %p90, %p91
      %p93 = scmp.ne.s32.totalorder %s82, %s83
      %p94 = scmp.eq.s32.totalorder %s22, 0
      %p95 = por %p93, %p94
      %p96 = scmp.ne.s32.totalorder %s82, %s83
      %p97 = scmp.eq.s32.totalorder %s23, 1
      %p98 = por %p96, %p97
      %p100 = scmp.ne.s32.totalorder %s83, %s99
      %p101 = scmp.eq.s32.totalorder %s23, 0
      %p102 = por %p100, %p101
      %s104 = sadd.s32 %s103, 1
      %p107 = scmp.eq.s32.totalorder %s17, 1
      %p108 = scmp.ne.s32.totalorder %s103, %s105
      %p109 = scmp.eq.s32.totalorder %s17, 0
      %p110 = por %p108, %p109
      %p111 = scmp.ne.s32.totalorder %s103, %s105
      %p112 = scmp.eq.s32.totalorder %s22, 1
      %p113 = por %p111, %p112
      %p114 = scmp.ne.s32.totalorder %s105, %s106
      %p115 = scmp.eq.s32.totalorder %s22, 0
      %p116 = por %p114, %p115
      %p117 = scmp.ne.s32.totalorder %s105, %s106
      %p118 = scmp.eq.s32.totalorder %s23, 1
      %p119 = por %p117, %p118
      %p121 = scmp.ne.s32.totalorder %s106, %s120
      %p122 = scmp.eq.s32.totalorder %s23, 0
      %p123 = por %p121, %p122
      %s125 = sadd.s32 %s124, 1
      %p128 = scmp.eq.s32.totalorder %s17, 1
      %p129 = scmp.ne.s32.totalorder %s124, %s126
      %p130 = scmp.eq.s32.totalorder %s17, 0
      %p131 = por %p129, %p130
      %p132 = scmp.ne.s32.totalorder %s124, %s126
      %p133 = scmp.eq.s32.totalorder %s22, 1
      %p134 = por %p132, %p133
      %p135 = scmp.ne.s32.totalorder %s126, %s127
      %p136 = scmp.eq.s32.totalorder %s22, 0
      %p137 = por %p135, %p136
      %p138 = scmp.ne.s32.totalorder %s126, %s127
      %p139 = scmp.eq.s32.totalorder %s23, 1
      %p140 = por %p138, %p139
      %p142 = scmp.ne.s32.totalorder %s127, %s141
      %p143 = scmp.eq.s32.totalorder %s23, 0
      %p144 = por %p142, %p143
      %s146 = sadd.s32 %s145, 1
      %p149 = scmp.eq.s32.totalorder %s17, 1
      %p150 = scmp.ne.s32.totalorder %s145, %s147
      %p151 = scmp.eq.s32.totalorder %s17, 0
      %p152 = por %p150, %p151
      %p153 = scmp.ne.s32.totalorder %s145, %s147
      %p154 = scmp.eq.s32.totalorder %s22, 1
      %p155 = por %p153, %p154
      %p156 = scmp.ne.s32.totalorder %s147, %s148
      %p157 = scmp.eq.s32.totalorder %s22, 0
      %p158 = por %p156, %p157
      %p159 = scmp.ne.s32.totalorder %s147, %s148
      %p160 = scmp.eq.s32.totalorder %s23, 1
      %p161 = por %p159, %p160
      %p163 = scmp.ne.s32.totalorder %s148, %s162
      %p164 = scmp.eq.s32.totalorder %s23, 0
      %p165 = por %p163, %p164
      %s167 = sadd.s32 %s166, 1
      %p170 = scmp.eq.s32.totalorder %s17, 1
      %p171 = scmp.ne.s32.totalorder %s166, %s168
      %p172 = scmp.eq.s32.totalorder %s17, 0
      %p173 = por %p171, %p172
      %p174 = scmp.ne.s32.totalorder %s166, %s168
      %p175 = scmp.eq.s32.totalorder %s22, 1
      %p176 = por %p174, %p175
      %p177 = scmp.ne.s32.totalorder %s168, %s169
      %p178 = scmp.eq.s32.totalorder %s22, 0
      %p179 = por %p177, %p178
      %p180 = scmp.ne.s32.totalorder %s168, %s169
      %p181 = scmp.eq.s32.totalorder %s23, 1
      %p182 = por %p180, %p181
      %p184 = scmp.ne.s32.totalorder %s169, %s183
      %p185 = scmp.eq.s32.totalorder %s23, 0
      %p186 = por %p184, %p185
      %s188 = sadd.s32 %s187, 1
      %p191 = scmp.eq.s32.totalorder %s17, 1
      %p192 = scmp.ne.s32.totalorder %s187, %s189
      %p193 = scmp.eq.s32.totalorder %s17, 0
      %p194 = por %p192, %p193
      %p195 = scmp.ne.s32.totalorder %s187, %s189
      %p196 = scmp.eq.s32.totalorder %s22, 1
      %p197 = por %p195, %p196
      %p198 = scmp.ne.s32.totalorder %s189, %s190
      %p199 = scmp.eq.s32.totalorder %s22, 0
      %p200 = por %p198, %p199
      %p201 = scmp.ne.s32.totalorder %s189, %s190
      %p202 = scmp.eq.s32.totalorder %s23, 1
      %p203 = por %p201, %p202
      %p205 = scmp.ne.s32.totalorder %s190, %s204
      %p206 = scmp.eq.s32.totalorder %s23, 0
      %p207 = por %p205, %p206
      %s208 = ssub.s32 %s17, %s24
      %p209 = scmp.eq.s32.totalorder %s208, 0
      %s211 = sadd.s32 %s210, 1
      %s212 = scalar_select %p209, %s210, %s211
      %p215 = pneg %p209
      %p216 = scmp.eq.s32.totalorder %s17, 1
      %p217 = por %p215, %p216
      %p218 = scmp.ne.s32.totalorder %s210, %s213
      %p219 = scmp.eq.s32.totalorder %s17, 0
      %p220 = por %p218, %p219
      %p221 = scmp.ne.s32.totalorder %s210, %s213
      %p222 = scmp.eq.s32.totalorder %s22, 1
      %p223 = por %p221, %p222
      %p224 = scmp.ne.s32.totalorder %s213, %s214
      %p225 = scmp.eq.s32.totalorder %s22, 0
      %p226 = por %p224, %p225
      %p227 = scmp.ne.s32.totalorder %s213, %s214
      %p228 = scmp.eq.s32.totalorder %s23, 1
      %p229 = por %p227, %p228
      %p231 = scmp.ne.s32.totalorder %s214, %s230
      %p232 = scmp.eq.s32.totalorder %s23, 0
      %p233 = por %p231, %p232
      %p234 = scmp.le.s32.totalorder 1, %s17
      %p235 = scmp.lt.s32.totalorder %s17, 3
      %p236 = pnand %p234, %p235
      %p237 = pneg %p236
      // Predicated region
      $region9: #{tpu_custom_call.1} parent=5 // pred_check
        _
      $region10: #{tpu_custom_call.1} parent=5 // pred_check_branch
        %239 = sbr.rel (%p236) target = $region12
      $region11: #{tpu_custom_call.1} parent=5 // pred_region
        %s240 = ssub.s32 %s17, 1
        // Predicated region
        $region13: #{tpu_custom_call.1} parent=11 // pred_check
          %p241 = pneg %p116
        $region14: #{tpu_custom_call.1} parent=11 // pred_check_branch
          %243 = sbr.rel (%p241) target = $region16
        $region15: #{tpu_custom_call.1} parent=11 // pred_region
          _
        $region16: #{tpu_custom_call.1} parent=11 // pred_fallthru
          _
        // Predicated region
        $region17: #{tpu_custom_call.1} parent=11 // pred_check
          %p244 = pneg %p137
        $region18: #{tpu_custom_call.1} parent=11 // pred_check_branch
          %246 = sbr.rel (%p244) target = $region20
        $region19: #{tpu_custom_call.1} parent=11 // pred_region
          _
        $region20: #{tpu_custom_call.1} parent=11 // pred_fallthru
          _
        // Predicated region
        $region21: #{tpu_custom_call.1} parent=11 // pred_check
          %p247 = pneg %p158
        $region22: #{tpu_custom_call.1} parent=11 // pred_check_branch
          %249 = sbr.rel (%p247) target = $region24
        $region23: #{tpu_custom_call.1} parent=11 // pred_region
          _
        $region24: #{tpu_custom_call.1} parent=11 // pred_fallthru
          _
        // Predicated region
        $region25: #{tpu_custom_call.1} parent=11 // pred_check
          %p250 = pneg %p179
        $region26: #{tpu_custom_call.1} parent=11 // pred_check_branch
          %252 = sbr.rel (%p250) target = $region28
        $region27: #{tpu_custom_call.1} parent=11 // pred_region
          _
        $region28: #{tpu_custom_call.1} parent=11 // pred_fallthru
          _
        // Predicated region
        $region29: #{tpu_custom_call.1} parent=11 // pred_check
          %p253 = pneg %p200
        $region30: #{tpu_custom_call.1} parent=11 // pred_check_branch
          %255 = sbr.rel (%p253) target = $region32
        $region31: #{tpu_custom_call.1} parent=11 // pred_region
          _
        $region32: #{tpu_custom_call.1} parent=11 // pred_fallthru
          _
      $region12: #{tpu_custom_call.1} parent=5 // pred_fallthru
        _
      %p256 = scmp.lt.s32.totalorder %s17, 2
      // Predicated region
      $region33: #{tpu_custom_call.1} parent=5 // pred_check
        %p257 = pneg %p256
      $region34: #{tpu_custom_call.1} parent=5 // pred_check_branch
        %259 = sbr.rel (%p257) target = $region36
      $region35: #{tpu_custom_call.1} parent=5 // pred_region
        // Predicated region
        $region37: #{tpu_custom_call.1} parent=35 // pred_check
          %p260 = pneg %p37
        $region38: #{tpu_custom_call.1} parent=35 // pred_check_branch
          %262 = sbr.rel (%p260) target = $region40
        $region39: #{tpu_custom_call.1} parent=35 // pred_region
          %s263 = smul.u32 16, %s17
          %p264 = scmp.lt.s32.totalorder %s263, 31
          %s265 = scalar_select %p264, %s263, 31
          %s266 = smul.addr %s265, 4
          %s267 = scalar_lea.vmem %s0, %s266
          %s268 = smul.u32 16, %s17
        $region40: #{tpu_custom_call.1} parent=35 // pred_fallthru
          _
        // Predicated region
        $region41: #{tpu_custom_call.1} parent=35 // pred_check
          %p269 = pneg %p63
        $region42: #{tpu_custom_call.1} parent=35 // pred_check_branch
          %271 = sbr.rel (%p269) target = $region44
        $region43: #{tpu_custom_call.1} parent=35 // pred_region
          %s272 = smul.u32 16, %s17
          %p273 = scmp.lt.s32.totalorder %s272, 31
          %s274 = scalar_select %p273, %s272, 31
          %s275 = smul.addr %s274, 8
          %s276 = scalar_lea.vmem %s1, %s275
          %s277 = smul.u32 16, %s17
        $region44: #{tpu_custom_call.1} parent=35 // pred_fallthru
          _
        // Predicated region
        $region45: #{tpu_custom_call.1} parent=35 // pred_check
          %p278 = pneg %p89
        $region46: #{tpu_custom_call.1} parent=35 // pred_check_branch
          %280 = sbr.rel (%p278) target = $region48
        $region47: #{tpu_custom_call.1} parent=35 // pred_region
          %s281 = smul.u32 16, %s17
          %p282 = scmp.lt.s32.totalorder %s281, 31
          %s283 = scalar_select %p282, %s281, 31
          %s284 = smul.addr %s283, 8
          %s285 = scalar_lea.vmem %s2, %s284
          %s286 = smul.u32 16, %s17
        $region48: #{tpu_custom_call.1} parent=35 // pred_fallthru
          _
      $region36: #{tpu_custom_call.1} parent=5 // pred_fallthru
        _
      %p287 = scmp.le.s32.totalorder 1, %s17
      %p288 = scmp.lt.s32.totalorder %s17, 3
      %p289 = pnand %p287, %p288
      %p290 = pneg %p289
      // Predicated region
      $region49: #{tpu_custom_call.1} parent=5 // pred_check
        _
      $region50: #{tpu_custom_call.1} parent=5 // pred_check_branch
        %292 = sbr.rel (%p289) target = $region52
      $region51: #{tpu_custom_call.1} parent=5 // pred_region
        %s293 = ssub.s32 %s17, 1
        %s294 = smul.u32 16, %s22
        %p295 = scmp.lt.s32.totalorder %s294, 31
        %s296 = scalar_select %p295, %s294, 31
        %s297 = smul.addr %s296, 4
        %s298 = scalar_lea.vmem %s0, %s297
        %p299 = pneg %p43
        %p300 = pneg %p40
        %s301 = smul.u32 16, %s22
        %p302 = scmp.lt.s32.totalorder %s301, 31
        %s303 = scalar_select %p302, %s301, 31
        %s304 = smul.addr %s303, 8
        %s305 = scalar_lea.vmem %s1, %s304
        %p306 = pneg %p69
        %p307 = pneg %p66
        %s308 = smul.u32 16, %s22
        %p309 = scmp.lt.s32.totalorder %s308, 31
        %s310 = scalar_select %p309, %s308, 31
        %s311 = smul.addr %s310, 8
        %s312 = scalar_lea.vmem %s2, %s311
        %p313 = pneg %p95
        %p314 = pneg %p92
        %p315 = pneg %p116
        %p316 = pneg %p113
        %p317 = pneg %p137
        %p318 = pneg %p134
        %p319 = pneg %p158
        %p320 = pneg %p155
        %p321 = pneg %p179
        %p322 = pneg %p176
        %p323 = pneg %p200
        %p324 = pneg %p197
        %p325 = pneg %p226
        %p326 = pneg %p223
        %s327 = sand.u32 %s213, 1
        %s328 = scalar_lea.sflag [#allocation3], %s327
        %s329 = sand.u32 %s213, 1
        %s330 = smul.addr %s329, 128
        %s331 = scalar_lea.vmem [#allocation2], %s330
        %s332 = smul.u32 16, %s22
        %p333 = scmp.lt.s32.totalorder %s332, 31
        %s334 = scalar_select %p333, %s332, 31
        %s335 = smul.addr %s334, 4
        %s336 = scalar_lea.vmem %s0, %s335
        %s337 = smul.u32 16, %s22
        %s338 = smul.u32 16, %s22
        %p339 = scmp.lt.s32.totalorder %s338, 31
        %s340 = scalar_select %p339, %s338, 31
        %s341 = smul.addr %s340, 8
        %s342 = scalar_lea.vmem %s1, %s341
        %s343 = smul.u32 16, %s22
        %s344 = smul.u32 16, %s22
        %p345 = scmp.lt.s32.totalorder %s344, 31
        %s346 = scalar_select %p345, %s344, 31
        %s347 = smul.addr %s346, 8
        %s348 = scalar_lea.vmem %s2, %s347
        %s349 = smul.u32 16, %s22
        %s350 = smul.u32 16, %s22
        %v352 = vld [vmem:[%s342] sm:$0xff]
        %v353 = vld [vmem:[%s342 + $0x8] sm:$0xff]
        %v354 = vld [vmem:[%s342 + $0x10] sm:$0xff]
        %v355 = vld [vmem:[%s342 + $0x18] sm:$0xff]
        %v356 = vld [vmem:[%s342 + $0x20] sm:$0xff]
        %v357 = vld [vmem:[%s342 + $0x28] sm:$0xff]
        %v358 = vld [vmem:[%s342 + $0x30] sm:$0xff]
        %v359 = vld [vmem:[%s342 + $0x38] sm:$0xff]
        %v360 = vld [vmem:[%s342 + $0x40] sm:$0xff]
        %v361 = vld [vmem:[%s342 + $0x48] sm:$0xff]
        %v362 = vld [vmem:[%s342 + $0x50] sm:$0xff]
        %v363 = vld [vmem:[%s342 + $0x58] sm:$0xff]
        %v364 = vld [vmem:[%s342 + $0x60] sm:$0xff]
        %v365 = vld [vmem:[%s342 + $0x68] sm:$0xff]
        %v366 = vld [vmem:[%s342 + $0x70] sm:$0xff]
        %v367 = vld [vmem:[%s342 + $0x78] sm:$0xff]
        %v368 = vld [vmem:[%s348] sm:$0xff]
        %v369 = vld [vmem:[%s348 + $0x8] sm:$0xff]
        %v370 = vld [vmem:[%s348 + $0x10] sm:$0xff]
        %v371 = vld [vmem:[%s348 + $0x18] sm:$0xff]
        %v372 = vld [vmem:[%s348 + $0x20] sm:$0xff]
        %v373 = vld [vmem:[%s348 + $0x28] sm:$0xff]
        %v374 = vld [vmem:[%s348 + $0x30] sm:$0xff]
        %v375 = vld [vmem:[%s348 + $0x38] sm:$0xff]
        %v376 = vld [vmem:[%s348 + $0x40] sm:$0xff]
        %v377 = vld [vmem:[%s348 + $0x48] sm:$0xff]
        %v378 = vld [vmem:[%s348 + $0x50] sm:$0xff]
        %v379 = vld [vmem:[%s348 + $0x58] sm:$0xff]
        %v380 = vld [vmem:[%s348 + $0x60] sm:$0xff]
        %v381 = vld [vmem:[%s348 + $0x68] sm:$0xff]
        %v382 = vld [vmem:[%s348 + $0x70] sm:$0xff]
        %v383 = vld [vmem:[%s348 + $0x78] sm:$0xff]
        %v384 = vld [vmem:[%s336] sm:$0xf]
        %v385 = vld [vmem:[%s336 + $0x4] sm:$0xf]
        %v386 = vld [vmem:[%s336 + $0x8] sm:$0xf]
        %v387 = vld [vmem:[%s336 + $0xc] sm:$0xf]
        %v388 = vld [vmem:[%s336 + $0x10] sm:$0xf]
        %v389 = vld [vmem:[%s336 + $0x14] sm:$0xf]
        %v390 = vld [vmem:[%s336 + $0x18] sm:$0xf]
        %v391 = vld [vmem:[%s336 + $0x1c] sm:$0xf]
        %v392 = vld [vmem:[%s336 + $0x20] sm:$0xf]
        %v393 = vld [vmem:[%s336 + $0x24] sm:$0xf]
        %v394 = vld [vmem:[%s336 + $0x28] sm:$0xf]
        %v395 = vld [vmem:[%s336 + $0x2c] sm:$0xf]
        %v396 = vld [vmem:[%s336 + $0x30] sm:$0xf]
        %v397 = vld [vmem:[%s336 + $0x34] sm:$0xf]
        %v398 = vld [vmem:[%s336 + $0x38] sm:$0xf]
        %v399 = vld [vmem:[%s336 + $0x3c] sm:$0xf]
        %v400 = vld [vmem:[%s3] sm:$0xff]
        %v401 = vld [vmem:[%s3 + $0x8] sm:$0xff]
        %v402 = vld [vmem:[%s3 + $0x10] sm:$0xff]
        %v403 = vld [vmem:[%s3 + $0x18] sm:$0xff]
        %v404 = vld [vmem:[%s3 + $0x20] sm:$0xff]
        %v405 = vld [vmem:[%s3 + $0x28] sm:$0xff]
        %v422 = vunpack.c.l.b16 %v384
        %v423 = vunpack.c.l.b16 %v385
        %v424 = vunpack.c.l.b16 %v386
        %v425 = vunpack.c.l.b16 %v387
        %v426 = vunpack.c.l.b16 %v388
        %v427 = vunpack.c.l.b16 %v389
        %v428 = vunpack.c.l.b16 %v390
        %v429 = vunpack.c.l.b16 %v391
        %v430 = vunpack.c.l.b16 %v392
        %v431 = vunpack.c.l.b16 %v393
        %v432 = vunpack.c.l.b16 %v394
        %v433 = vunpack.c.l.b16 %v395
        %v434 = vunpack.c.l.b16 %v396
        %v435 = vunpack.c.l.b16 %v397
        %v436 = vunpack.c.l.b16 %v398
        %v437 = vunpack.c.l.b16 %v399
        %v438 = vpack.c.b16 %v423, %v422
        %v439 = vpack.c.b16 %v425, %v424
        %v440 = vpack.c.b16 %v427, %v426
        %v441 = vpack.c.b16 %v429, %v428
        %v442 = vpack.c.b16 %v431, %v430
        %v443 = vpack.c.b16 %v433, %v432
        %v444 = vpack.c.b16 %v435, %v434
        %v445 = vpack.c.b16 %v437, %v436
        %v452 = vunpack.c.l.b16 %v400
        %v453 = vunpack.c.h.b16 %v400
        %v454 = vunpack.c.l.b16 %v401
        %v455 = vunpack.c.h.b16 %v401
        %v456 = vunpack.c.l.b16 %v402
        %v457 = vunpack.c.h.b16 %v402
        %v458 = vunpack.c.l.b16 %v403
        %v459 = vunpack.c.h.b16 %v403
        %v460 = vunpack.c.l.b16 %v404
        %v461 = vunpack.c.h.b16 %v404
        %v462 = vunpack.c.l.b16 %v405
        %v463 = vunpack.c.h.b16 %v405
        %v464 = vpack.c.b16 %v454, %v452
        %v465 = vpack.c.b16 %v455, %v453
        %v466 = vpack.c.b16 %v458, %v456
        %v467 = vpack.c.b16 %v459, %v457
        %v468 = vpack.c.b16 %v462, %v460
        %v469 = vpack.c.b16 %v463, %v461
        %vm476 = vcmask 392192
        %v478 = vsel %vm476, %v438, 0
        %v481 = vsel %vm476, %v439, 0
        %v484 = vsel %vm476, %v440, 0
        %v487 = vsel %vm476, %v441, 0
        %v490 = vsel %vm476, %v442, 0
        %v493 = vsel %vm476, %v443, 0
        %v496 = vsel %vm476, %v444, 0
        %v499 = vsel %vm476, %v445, 0
        %501 = vmatpush.bf16.msra.mxu0 0
        %502 = vmatpush.bf16.msra.mxu0 0
        %503 = vmatpush.bf16.msra.mxu0 0
        %504 = vmatpush.bf16.msra.mxu0 0
        %505 = vmatpush.bf16.msra.mxu0 0
        %506 = vmatpush.bf16.msra.mxu0 %v468
        %507 = vmatpush.bf16.msra.mxu0 %v466
        %508 = vmatpush.bf16.msra.mxu0 %v464
        %509 = vmatmul.bf16.gmra.mxu0 %v478
        %v510 = vpop.f32.mrf.mxu0
        %v511 = vadd.f32 0.0, %v510
        %v512 = vpop.f32.mrf.mxu0
        %v513 = vadd.f32 0.0, %v512
        %514 = vmatmul.bf16.gmra.mxu0 %v481
        %v515 = vpop.f32.mrf.mxu0
        %v516 = vadd.f32 0.0, %v515
        %v517 = vpop.f32.mrf.mxu0
        %v518 = vadd.f32 0.0, %v517
        %519 = vmatmul.bf16.gmra.mxu0 %v484
        %v520 = vpop.f32.mrf.mxu0
        %v521 = vadd.f32 0.0, %v520
        %v522 = vpop.f32.mrf.mxu0
        %v523 = vadd.f32 0.0, %v522
        %524 = vmatmul.bf16.gmra.mxu0 %v487
        %v525 = vpop.f32.mrf.mxu0
        %v526 = vadd.f32 0.0, %v525
        %v527 = vpop.f32.mrf.mxu0
        %v528 = vadd.f32 0.0, %v527
        %529 = vmatmul.bf16.gmra.mxu0 %v490
        %v530 = vpop.f32.mrf.mxu0
        %v531 = vadd.f32 0.0, %v530
        %v532 = vpop.f32.mrf.mxu0
        %v533 = vadd.f32 0.0, %v532
        %534 = vmatmul.bf16.gmra.mxu0 %v493
        %v535 = vpop.f32.mrf.mxu0
        %v536 = vadd.f32 0.0, %v535
        %v537 = vpop.f32.mrf.mxu0
        %v538 = vadd.f32 0.0, %v537
        %539 = vmatmul.bf16.gmra.mxu0 %v496
        %v540 = vpop.f32.mrf.mxu0
        %v541 = vadd.f32 0.0, %v540
        %v542 = vpop.f32.mrf.mxu0
        %v543 = vadd.f32 0.0, %v542
        %544 = vmatmul.bf16.gmra.mxu0 %v499
        %v545 = vpop.f32.mrf.mxu0
        %v546 = vadd.f32 0.0, %v545
        %v547 = vpop.f32.mrf.mxu0
        %v548 = vadd.f32 0.0, %v547
        %549 = vdwg.mxu0
        %550 = vmatpush.bf16.msra.mxu0 0
        %551 = vmatpush.bf16.msra.mxu0 0
        %552 = vmatpush.bf16.msra.mxu0 0
        %553 = vmatpush.bf16.msra.mxu0 0
        %554 = vmatpush.bf16.msra.mxu0 0
        %555 = vmatpush.bf16.msra.mxu0 %v469
        %556 = vmatpush.bf16.msra.mxu0 %v467
        %557 = vmatpush.bf16.msra.mxu0 %v465
        %558 = vmatmul.bf16.gmra.mxu0 %v478
        %v559 = vpop.f32.mrf.mxu0
        %v560 = vadd.f32 0.0, %v559
        %v561 = vpop.f32.mrf.mxu0
        %v562 = vadd.f32 0.0, %v561
        %563 = vmatmul.bf16.gmra.mxu0 %v481
        %v564 = vpop.f32.mrf.mxu0
        %v565 = vadd.f32 0.0, %v564
        %v566 = vpop.f32.mrf.mxu0
        %v567 = vadd.f32 0.0, %v566
        %568 = vmatmul.bf16.gmra.mxu0 %v484
        %v569 = vpop.f32.mrf.mxu0
        %v570 = vadd.f32 0.0, %v569
        %v571 = vpop.f32.mrf.mxu0
        %v572 = vadd.f32 0.0, %v571
        %573 = vmatmul.bf16.gmra.mxu0 %v487
        %v574 = vpop.f32.mrf.mxu0
        %v575 = vadd.f32 0.0, %v574
        %v576 = vpop.f32.mrf.mxu0
        %v577 = vadd.f32 0.0, %v576
        %578 = vmatmul.bf16.gmra.mxu0 %v490
        %v579 = vpop.f32.mrf.mxu0
        %v580 = vadd.f32 0.0, %v579
        %v581 = vpop.f32.mrf.mxu0
        %v582 = vadd.f32 0.0, %v581
        %583 = vmatmul.bf16.gmra.mxu0 %v493
        %v584 = vpop.f32.mrf.mxu0
        %v585 = vadd.f32 0.0, %v584
        %v586 = vpop.f32.mrf.mxu0
        %v587 = vadd.f32 0.0, %v586
        %588 = vmatmul.bf16.gmra.mxu0 %v496
        %v589 = vpop.f32.mrf.mxu0
        %v590 = vadd.f32 0.0, %v589
        %v591 = vpop.f32.mrf.mxu0
        %v592 = vadd.f32 0.0, %v591
        %593 = vmatmul.bf16.gmra.mxu0 %v499
        %v594 = vpop.f32.mrf.mxu0
        %v595 = vadd.f32 0.0, %v594
        %v596 = vpop.f32.mrf.mxu0
        %v597 = vadd.f32 0.0, %v596
        %598 = vdwg.mxu0
        %v599 = vpack.c.bf16 %v353, %v352
        %v600 = vpack.c.bf16 %v355, %v354
        %v601 = vpack.c.bf16 %v357, %v356
        %v602 = vpack.c.bf16 %v359, %v358
        %v603 = vpack.c.bf16 %v361, %v360
        %v604 = vpack.c.bf16 %v363, %v362
        %v605 = vpack.c.bf16 %v365, %v364
        %v606 = vpack.c.bf16 %v367, %v366
        %v607 = vld [vmem:[%s4] sm:$0xff]
        %v608 = vld [vmem:[%s4 + $0x8] sm:$0xff]
        %v609 = vld [vmem:[%s4 + $0x10] sm:$0xff]
        %v610 = vld [vmem:[%s4 + $0x18] sm:$0xff]
        %v611 = vld [vmem:[%s4 + $0x20] sm:$0xff]
        %v612 = vld [vmem:[%s4 + $0x28] sm:$0xff]
        %v613 = vld [vmem:[%s4 + $0x30] sm:$0xff]
        %v614 = vld [vmem:[%s4 + $0x38] sm:$0xff]
        %v615 = vld [vmem:[%s4 + $0x40] sm:$0xff]
        %v616 = vld [vmem:[%s4 + $0x48] sm:$0xff]
        %v617 = vld [vmem:[%s4 + $0x50] sm:$0xff]
        %v618 = vld [vmem:[%s4 + $0x58] sm:$0xff]
        %v619 = vld [vmem:[%s4 + $0x60] sm:$0xff]
        %v620 = vld [vmem:[%s4 + $0x68] sm:$0xff]
        %v621 = vld [vmem:[%s4 + $0x70] sm:$0xff]
        %v622 = vld [vmem:[%s4 + $0x78] sm:$0xff]
        %v639 = vunpack.c.l.b16 %v607
        %v640 = vunpack.c.h.b16 %v607
        %v641 = vunpack.c.l.b16 %v608
        %v642 = vunpack.c.h.b16 %v608
        %v643 = vunpack.c.l.b16 %v609
        %v644 = vunpack.c.h.b16 %v609
        %v645 = vunpack.c.l.b16 %v610
        %v646 = vunpack.c.h.b16 %v610
        %v647 = vunpack.c.l.b16 %v611
        %v648 = vunpack.c.h.b16 %v611
        %v649 = vunpack.c.l.b16 %v612
        %v650 = vunpack.c.h.b16 %v612
        %v651 = vunpack.c.l.b16 %v613
        %v652 = vunpack.c.h.b16 %v613
        %v653 = vunpack.c.l.b16 %v614
        %v654 = vunpack.c.h.b16 %v614
        %v655 = vunpack.c.l.b16 %v615
        %v656 = vunpack.c.h.b16 %v615
        %v657 = vunpack.c.l.b16 %v616
        %v658 = vunpack.c.h.b16 %v616
        %v659 = vunpack.c.l.b16 %v617
        %v660 = vunpack.c.h.b16 %v617
        %v661 = vunpack.c.l.b16 %v618
        %v662 = vunpack.c.h.b16 %v618
        %v663 = vunpack.c.l.b16 %v619
        %v664 = vunpack.c.h.b16 %v619
        %v665 = vunpack.c.l.b16 %v620
        %v666 = vunpack.c.h.b16 %v620
        %v667 = vunpack.c.l.b16 %v621
        %v668 = vunpack.c.h.b16 %v621
        %v669 = vunpack.c.l.b16 %v622
        %v670 = vunpack.c.h.b16 %v622
        %v671 = vpack.c.b16 %v641, %v639
        %v672 = vpack.c.b16 %v642, %v640
        %v673 = vpack.c.b16 %v645, %v643
        %v674 = vpack.c.b16 %v646, %v644
        %v675 = vpack.c.b16 %v649, %v647
        %v676 = vpack.c.b16 %v650, %v648
        %v677 = vpack.c.b16 %v653, %v651
        %v678 = vpack.c.b16 %v654, %v652
        %v679 = vpack.c.b16 %v657, %v655
        %v680 = vpack.c.b16 %v658, %v656
        %v681 = vpack.c.b16 %v661, %v659
        %v682 = vpack.c.b16 %v662, %v660
        %v683 = vpack.c.b16 %v665, %v663
        %v684 = vpack.c.b16 %v666, %v664
        %v685 = vpack.c.b16 %v669, %v667
        %v686 = vpack.c.b16 %v670, %v668
        %703 = vmatpush.bf16.msra.mxu0 %v685
        %704 = vmatpush.bf16.msra.mxu0 %v683
        %705 = vmatpush.bf16.msra.mxu0 %v681
        %706 = vmatpush.bf16.msra.mxu0 %v679
        %707 = vmatpush.bf16.msra.mxu0 %v677
        %708 = vmatpush.bf16.msra.mxu0 %v675
        %709 = vmatpush.bf16.msra.mxu0 %v673
        %710 = vmatpush.bf16.msra.mxu0 %v671
        %711 = vmatmul.bf16.gmra.mxu0 %v599
        %v712 = vpop.f32.mrf.mxu0
        %v713 = vadd.f32 0.0, %v712
        %v714 = vpop.f32.mrf.mxu0
        %v715 = vadd.f32 0.0, %v714
        %716 = vmatmul.bf16.gmra.mxu0 %v600
        %v717 = vpop.f32.mrf.mxu0
        %v718 = vadd.f32 0.0, %v717
        %v719 = vpop.f32.mrf.mxu0
        %v720 = vadd.f32 0.0, %v719
        %721 = vmatmul.bf16.gmra.mxu0 %v601
        %v722 = vpop.f32.mrf.mxu0
        %v723 = vadd.f32 0.0, %v722
        %v724 = vpop.f32.mrf.mxu0
        %v725 = vadd.f32 0.0, %v724
        %726 = vmatmul.bf16.gmra.mxu0 %v602
        %v727 = vpop.f32.mrf.mxu0
        %v728 = vadd.f32 0.0, %v727
        %v729 = vpop.f32.mrf.mxu0
        %v730 = vadd.f32 0.0, %v729
        %731 = vmatmul.bf16.gmra.mxu0 %v603
        %v732 = vpop.f32.mrf.mxu0
        %v733 = vadd.f32 0.0, %v732
        %v734 = vpop.f32.mrf.mxu0
        %v735 = vadd.f32 0.0, %v734
        %736 = vmatmul.bf16.gmra.mxu0 %v604
        %v737 = vpop.f32.mrf.mxu0
        %v738 = vadd.f32 0.0, %v737
        %v739 = vpop.f32.mrf.mxu0
        %v740 = vadd.f32 0.0, %v739
        %741 = vmatmul.bf16.gmra.mxu0 %v605
        %v742 = vpop.f32.mrf.mxu0
        %v743 = vadd.f32 0.0, %v742
        %v744 = vpop.f32.mrf.mxu0
        %v745 = vadd.f32 0.0, %v744
        %746 = vmatmul.bf16.gmra.mxu0 %v606
        %v747 = vpop.f32.mrf.mxu0
        %v748 = vadd.f32 0.0, %v747
        %v749 = vpop.f32.mrf.mxu0
        %v750 = vadd.f32 0.0, %v749
        %751 = vdwg.mxu0
        %752 = vmatpush.bf16.msra.mxu0 %v686
        %753 = vmatpush.bf16.msra.mxu0 %v684
        %754 = vmatpush.bf16.msra.mxu0 %v682
        %755 = vmatpush.bf16.msra.mxu0 %v680
        %756 = vmatpush.bf16.msra.mxu0 %v678
        %757 = vmatpush.bf16.msra.mxu0 %v676
        %758 = vmatpush.bf16.msra.mxu0 %v674
        %759 = vmatpush.bf16.msra.mxu0 %v672
        %760 = vmatmul.bf16.gmra.mxu0 %v599
        %v761 = vpop.f32.mrf.mxu0
        %v762 = vadd.f32 0.0, %v761
        %v763 = vpop.f32.mrf.mxu0
        %v764 = vadd.f32 0.0, %v763
        %765 = vmatmul.bf16.gmra.mxu0 %v600
        %v766 = vpop.f32.mrf.mxu0
        %v767 = vadd.f32 0.0, %v766
        %v768 = vpop.f32.mrf.mxu0
        %v769 = vadd.f32 0.0, %v768
        %770 = vmatmul.bf16.gmra.mxu0 %v601
        %v771 = vpop.f32.mrf.mxu0
        %v772 = vadd.f32 0.0, %v771
        %v773 = vpop.f32.mrf.mxu0
        %v774 = vadd.f32 0.0, %v773
        %775 = vmatmul.bf16.gmra.mxu0 %v602
        %v776 = vpop.f32.mrf.mxu0
        %v777 = vadd.f32 0.0, %v776
        %v778 = vpop.f32.mrf.mxu0
        %v779 = vadd.f32 0.0, %v778
        %780 = vmatmul.bf16.gmra.mxu0 %v603
        %v781 = vpop.f32.mrf.mxu0
        %v782 = vadd.f32 0.0, %v781
        %v783 = vpop.f32.mrf.mxu0
        %v784 = vadd.f32 0.0, %v783
        %785 = vmatmul.bf16.gmra.mxu0 %v604
        %v786 = vpop.f32.mrf.mxu0
        %v787 = vadd.f32 0.0, %v786
        %v788 = vpop.f32.mrf.mxu0
        %v789 = vadd.f32 0.0, %v788
        %790 = vmatmul.bf16.gmra.mxu0 %v605
        %v791 = vpop.f32.mrf.mxu0
        %v792 = vadd.f32 0.0, %v791
        %v793 = vpop.f32.mrf.mxu0
        %v794 = vadd.f32 0.0, %v793
        %795 = vmatmul.bf16.gmra.mxu0 %v606
        %v796 = vpop.f32.mrf.mxu0
        %v797 = vadd.f32 0.0, %v796
        %v798 = vpop.f32.mrf.mxu0
        %v799 = vadd.f32 0.0, %v798
        %800 = vdwg.mxu0
        %v801 = vadd.f32 %v511, %v713
        %v802 = vadd.f32 %v513, %v715
        %v803 = vadd.f32 %v516, %v718
        %v804 = vadd.f32 %v518, %v720
        %v805 = vadd.f32 %v521, %v723
        %v806 = vadd.f32 %v523, %v725
        %v807 = vadd.f32 %v526, %v728
        %v808 = vadd.f32 %v528, %v730
        %v809 = vadd.f32 %v531, %v733
        %v810 = vadd.f32 %v533, %v735
        %v811 = vadd.f32 %v536, %v738
        %v812 = vadd.f32 %v538, %v740
        %v813 = vadd.f32 %v541, %v743
        %v814 = vadd.f32 %v543, %v745
        %v815 = vadd.f32 %v546, %v748
        %v816 = vadd.f32 %v548, %v750
        %v817 = vld [vmem:[%s5] sm:$0x1]
        %v819 = vperm.slane %v817, 0
        %v821 = vadd.f32 %v801, %v819
        %v822 = vadd.f32 %v802, %v819
        %v823 = vadd.f32 %v803, %v819
        %v824 = vadd.f32 %v804, %v819
        %v825 = vadd.f32 %v805, %v819
        %v826 = vadd.f32 %v806, %v819
        %v827 = vadd.f32 %v807, %v819
        %v828 = vadd.f32 %v808, %v819
        %v829 = vadd.f32 %v809, %v819
        %v830 = vadd.f32 %v810, %v819
        %v831 = vadd.f32 %v811, %v819
        %v832 = vadd.f32 %v812, %v819
        %v833 = vadd.f32 %v813, %v819
        %v834 = vadd.f32 %v814, %v819
        %v835 = vadd.f32 %v815, %v819
        %v836 = vadd.f32 %v816, %v819
        %v837 = vxor.u32 %v821, 2147483648
        %v838 = vxor.u32 %v822, 2147483648
        %v839 = vxor.u32 %v823, 2147483648
        %v840 = vxor.u32 %v824, 2147483648
        %v841 = vxor.u32 %v825, 2147483648
        %v842 = vxor.u32 %v826, 2147483648
        %v843 = vxor.u32 %v827, 2147483648
        %v844 = vxor.u32 %v828, 2147483648
        %v845 = vxor.u32 %v829, 2147483648
        %v846 = vxor.u32 %v830, 2147483648
        %v847 = vxor.u32 %v831, 2147483648
        %v848 = vxor.u32 %v832, 2147483648
        %v849 = vxor.u32 %v833, 2147483648
        %v850 = vxor.u32 %v834, 2147483648
        %v851 = vxor.u32 %v835, 2147483648
        %v852 = vxor.u32 %v836, 2147483648
        %v853 = vmul.f32 %v837, 1.442695
        %v854 = vpow.pop %v853
        %v855 = vmul.f32 %v838, 1.442695
        %v856 = vpow.pop %v855
        %v857 = vmul.f32 %v839, 1.442695
        %v858 = vpow.pop %v857
        %v859 = vmul.f32 %v840, 1.442695
        %v860 = vpow.pop %v859
        %v861 = vmul.f32 %v841, 1.442695
        %v862 = vpow.pop %v861
        %v863 = vmul.f32 %v842, 1.442695
        %v864 = vpow.pop %v863
        %v865 = vmul.f32 %v843, 1.442695
        %v866 = vpow.pop %v865
        %v867 = vmul.f32 %v844, 1.442695
        %v868 = vpow.pop %v867
        %v869 = vmul.f32 %v845, 1.442695
        %v870 = vpow.pop %v869
        %v871 = vmul.f32 %v846, 1.442695
        %v872 = vpow.pop %v871
        %v873 = vmul.f32 %v847, 1.442695
        %v874 = vpow.pop %v873
        %v875 = vmul.f32 %v848, 1.442695
        %v876 = vpow.pop %v875
        %v877 = vmul.f32 %v849, 1.442695
        %v878 = vpow.pop %v877
        %v879 = vmul.f32 %v850, 1.442695
        %v880 = vpow.pop %v879
        %v881 = vmul.f32 %v851, 1.442695
        %v882 = vpow.pop %v881
        %v883 = vmul.f32 %v852, 1.442695
        %v884 = vpow.pop %v883
        %v885 = vadd.f32 %v854, 1.0
        %v886 = vadd.f32 %v856, 1.0
        %v887 = vadd.f32 %v858, 1.0
        %v888 = vadd.f32 %v860, 1.0
        %v889 = vadd.f32 %v862, 1.0
        %v890 = vadd.f32 %v864, 1.0
        %v891 = vadd.f32 %v866, 1.0
        %v892 = vadd.f32 %v868, 1.0
        %v893 = vadd.f32 %v870, 1.0
        %v894 = vadd.f32 %v872, 1.0
        %v895 = vadd.f32 %v874, 1.0
        %v896 = vadd.f32 %v876, 1.0
        %v897 = vadd.f32 %v878, 1.0
        %v898 = vadd.f32 %v880, 1.0
        %v899 = vadd.f32 %v882, 1.0
        %v900 = vadd.f32 %v884, 1.0
        %v901 = vrcp.pop %v885
        %v902 = vmul.f32 %v885, %v901
        %v903 = vsub.f32 1.0, %v902
        %v904 = vmul.f32 %v901, %v903
        %v905 = vadd.f32 %v901, %v904
        %vm906 = vweird.f32 %v885
        %vm907 = vweird.f32 %v901
        %vm908 = vmor %vm906, %vm907
        %v909 = vsel %vm908, %v901, %v905
        %v910 = vand.u32 2147483647, %v885
        %vm911 = vcmp.eq.f32.partialorder %v910, 8.507059e+37
        %v912 = vand.u32 %v885, 2147483648
        %v913 = vor.u32 1.1754944e-38, %v912
        %v914 = vsel %vm911, %v913, %v909
        %v915 = vmul.f32 1.0, %v914
        %v916 = vrcp.pop %v886
        %v917 = vmul.f32 %v886, %v916
        %v918 = vsub.f32 1.0, %v917
        %v919 = vmul.f32 %v916, %v918
        %v920 = vadd.f32 %v916, %v919
        %vm921 = vweird.f32 %v886
        %vm922 = vweird.f32 %v916
        %vm923 = vmor %vm921, %vm922
        %v924 = vsel %vm923, %v916, %v920
        %v925 = vand.u32 2147483647, %v886
        %vm926 = vcmp.eq.f32.partialorder %v925, 8.507059e+37
        %v927 = vand.u32 %v886, 2147483648
        %v928 = vor.u32 1.1754944e-38, %v927
        %v929 = vsel %vm926, %v928, %v924
        %v930 = vmul.f32 1.0, %v929
        %v931 = vrcp.pop %v887
        %v932 = vmul.f32 %v887, %v931
        %v933 = vsub.f32 1.0, %v932
        %v934 = vmul.f32 %v931, %v933
        %v935 = vadd.f32 %v931, %v934
        %vm936 = vweird.f32 %v887
        %vm937 = vweird.f32 %v931
        %vm938 = vmor %vm936, %vm937
        %v939 = vsel %vm938, %v931, %v935
        %v940 = vand.u32 2147483647, %v887
        %vm941 = vcmp.eq.f32.partialorder %v940, 8.507059e+37
        %v942 = vand.u32 %v887, 2147483648
        %v943 = vor.u32 1.1754944e-38, %v942
        %v944 = vsel %vm941, %v943, %v939
        %v945 = vmul.f32 1.0, %v944
        %v946 = vrcp.pop %v888
        %v947 = vmul.f32 %v888, %v946
        %v948 = vsub.f32 1.0, %v947
        %v949 = vmul.f32 %v946, %v948
        %v950 = vadd.f32 %v946, %v949
        %vm951 = vweird.f32 %v888
        %vm952 = vweird.f32 %v946
        %vm953 = vmor %vm951, %vm952
        %v954 = vsel %vm953, %v946, %v950
        %v955 = vand.u32 2147483647, %v888
        %vm956 = vcmp.eq.f32.partialorder %v955, 8.507059e+37
        %v957 = vand.u32 %v888, 2147483648
        %v958 = vor.u32 1.1754944e-38, %v957
        %v959 = vsel %vm956, %v958, %v954
        %v960 = vmul.f32 1.0, %v959
        %v961 = vrcp.pop %v889
        %v962 = vmul.f32 %v889, %v961
        %v963 = vsub.f32 1.0, %v962
        %v964 = vmul.f32 %v961, %v963
        %v965 = vadd.f32 %v961, %v964
        %vm966 = vweird.f32 %v889
        %vm967 = vweird.f32 %v961
        %vm968 = vmor %vm966, %vm967
        %v969 = vsel %vm968, %v961, %v965
        %v970 = vand.u32 2147483647, %v889
        %vm971 = vcmp.eq.f32.partialorder %v970, 8.507059e+37
        %v972 = vand.u32 %v889, 2147483648
        %v973 = vor.u32 1.1754944e-38, %v972
        %v974 = vsel %vm971, %v973, %v969
        %v975 = vmul.f32 1.0, %v974
        %v976 = vrcp.pop %v890
        %v977 = vmul.f32 %v890, %v976
        %v978 = vsub.f32 1.0, %v977
        %v979 = vmul.f32 %v976, %v978
        %v980 = vadd.f32 %v976, %v979
        %vm981 = vweird.f32 %v890
        %vm982 = vweird.f32 %v976
        %vm983 = vmor %vm981, %vm982
        %v984 = vsel %vm983, %v976, %v980
        %v985 = vand.u32 2147483647, %v890
        %vm986 = vcmp.eq.f32.partialorder %v985, 8.507059e+37
        %v987 = vand.u32 %v890, 2147483648
        %v988 = vor.u32 1.1754944e-38, %v987
        %v989 = vsel %vm986, %v988, %v984
        %v990 = vmul.f32 1.0, %v989
        %v991 = vrcp.pop %v891
        %v992 = vmul.f32 %v891, %v991
        %v993 = vsub.f32 1.0, %v992
        %v994 = vmul.f32 %v991, %v993
        %v995 = vadd.f32 %v991, %v994
        %vm996 = vweird.f32 %v891
        %vm997 = vweird.f32 %v991
        %vm998 = vmor %vm996, %vm997
        %v999 = vsel %vm998, %v991, %v995
        %v1000 = vand.u32 2147483647, %v891
        %vm1001 = vcmp.eq.f32.partialorder %v1000, 8.507059e+37
        %v1002 = vand.u32 %v891, 2147483648
        %v1003 = vor.u32 1.1754944e-38, %v1002
        %v1004 = vsel %vm1001, %v1003, %v999
        %v1005 = vmul.f32 1.0, %v1004
        %v1006 = vrcp.pop %v892
        %v1007 = vmul.f32 %v892, %v1006
        %v1008 = vsub.f32 1.0, %v1007
        %v1009 = vmul.f32 %v1006, %v1008
        %v1010 = vadd.f32 %v1006, %v1009
        %vm1011 = vweird.f32 %v892
        %vm1012 = vweird.f32 %v1006
        %vm1013 = vmor %vm1011, %vm1012
        %v1014 = vsel %vm1013, %v1006, %v1010
        %v1015 = vand.u32 2147483647, %v892
        %vm1016 = vcmp.eq.f32.partialorder %v1015, 8.507059e+37
        %v1017 = vand.u32 %v892, 2147483648
        %v1018 = vor.u32 1.1754944e-38, %v1017
        %v1019 = vsel %vm1016, %v1018, %v1014
        %v1020 = vmul.f32 1.0, %v1019
        %v1021 = vrcp.pop %v893
        %v1022 = vmul.f32 %v893, %v1021
        %v1023 = vsub.f32 1.0, %v1022
        %v1024 = vmul.f32 %v1021, %v1023
        %v1025 = vadd.f32 %v1021, %v1024
        %vm1026 = vweird.f32 %v893
        %vm1027 = vweird.f32 %v1021
        %vm1028 = vmor %vm1026, %vm1027
        %v1029 = vsel %vm1028, %v1021, %v1025
        %v1030 = vand.u32 2147483647, %v893
        %vm1031 = vcmp.eq.f32.partialorder %v1030, 8.507059e+37
        %v1032 = vand.u32 %v893, 2147483648
        %v1033 = vor.u32 1.1754944e-38, %v1032
        %v1034 = vsel %vm1031, %v1033, %v1029
        %v1035 = vmul.f32 1.0, %v1034
        %v1036 = vrcp.pop %v894
        %v1037 = vmul.f32 %v894, %v1036
        %v1038 = vsub.f32 1.0, %v1037
        %v1039 = vmul.f32 %v1036, %v1038
        %v1040 = vadd.f32 %v1036, %v1039
        %vm1041 = vweird.f32 %v894
        %vm1042 = vweird.f32 %v1036
        %vm1043 = vmor %vm1041, %vm1042
        %v1044 = vsel %vm1043, %v1036, %v1040
        %v1045 = vand.u32 2147483647, %v894
        %vm1046 = vcmp.eq.f32.partialorder %v1045, 8.507059e+37
        %v1047 = vand.u32 %v894, 2147483648
        %v1048 = vor.u32 1.1754944e-38, %v1047
        %v1049 = vsel %vm1046, %v1048, %v1044
        %v1050 = vmul.f32 1.0, %v1049
        %v1051 = vrcp.pop %v895
        %v1052 = vmul.f32 %v895, %v1051
        %v1053 = vsub.f32 1.0, %v1052
        %v1054 = vmul.f32 %v1051, %v1053
        %v1055 = vadd.f32 %v1051, %v1054
        %vm1056 = vweird.f32 %v895
        %vm1057 = vweird.f32 %v1051
        %vm1058 = vmor %vm1056, %vm1057
        %v1059 = vsel %vm1058, %v1051, %v1055
        %v1060 = vand.u32 2147483647, %v895
        %vm1061 = vcmp.eq.f32.partialorder %v1060, 8.507059e+37
        %v1062 = vand.u32 %v895, 2147483648
        %v1063 = vor.u32 1.1754944e-38, %v1062
        %v1064 = vsel %vm1061, %v1063, %v1059
        %v1065 = vmul.f32 1.0, %v1064
        %v1066 = vrcp.pop %v896
        %v1067 = vmul.f32 %v896, %v1066
        %v1068 = vsub.f32 1.0, %v1067
        %v1069 = vmul.f32 %v1066, %v1068
        %v1070 = vadd.f32 %v1066, %v1069
        %vm1071 = vweird.f32 %v896
        %vm1072 = vweird.f32 %v1066
        %vm1073 = vmor %vm1071, %vm1072
        %v1074 = vsel %vm1073, %v1066, %v1070
        %v1075 = vand.u32 2147483647, %v896
        %vm1076 = vcmp.eq.f32.partialorder %v1075, 8.507059e+37
        %v1077 = vand.u32 %v896, 2147483648
        %v1078 = vor.u32 1.1754944e-38, %v1077
        %v1079 = vsel %vm1076, %v1078, %v1074
        %v1080 = vmul.f32 1.0, %v1079
        %v1081 = vrcp.pop %v897
        %v1082 = vmul.f32 %v897, %v1081
        %v1083 = vsub.f32 1.0, %v1082
        %v1084 = vmul.f32 %v1081, %v1083
        %v1085 = vadd.f32 %v1081, %v1084
        %vm1086 = vweird.f32 %v897
        %vm1087 = vweird.f32 %v1081
        %vm1088 = vmor %vm1086, %vm1087
        %v1089 = vsel %vm1088, %v1081, %v1085
        %v1090 = vand.u32 2147483647, %v897
        %vm1091 = vcmp.eq.f32.partialorder %v1090, 8.507059e+37
        %v1092 = vand.u32 %v897, 2147483648
        %v1093 = vor.u32 1.1754944e-38, %v1092
        %v1094 = vsel %vm1091, %v1093, %v1089
        %v1095 = vmul.f32 1.0, %v1094
        %v1096 = vrcp.pop %v898
        %v1097 = vmul.f32 %v898, %v1096
        %v1098 = vsub.f32 1.0, %v1097
        %v1099 = vmul.f32 %v1096, %v1098
        %v1100 = vadd.f32 %v1096, %v1099
        %vm1101 = vweird.f32 %v898
        %vm1102 = vweird.f32 %v1096
        %vm1103 = vmor %vm1101, %vm1102
        %v1104 = vsel %vm1103, %v1096, %v1100
        %v1105 = vand.u32 2147483647, %v898
        %vm1106 = vcmp.eq.f32.partialorder %v1105, 8.507059e+37
        %v1107 = vand.u32 %v898, 2147483648
        %v1108 = vor.u32 1.1754944e-38, %v1107
        %v1109 = vsel %vm1106, %v1108, %v1104
        %v1110 = vmul.f32 1.0, %v1109
        %v1111 = vrcp.pop %v899
        %v1112 = vmul.f32 %v899, %v1111
        %v1113 = vsub.f32 1.0, %v1112
        %v1114 = vmul.f32 %v1111, %v1113
        %v1115 = vadd.f32 %v1111, %v1114
        %vm1116 = vweird.f32 %v899
        %vm1117 = vweird.f32 %v1111
        %vm1118 = vmor %vm1116, %vm1117
        %v1119 = vsel %vm1118, %v1111, %v1115
        %v1120 = vand.u32 2147483647, %v899
        %vm1121 = vcmp.eq.f32.partialorder %v1120, 8.507059e+37
        %v1122 = vand.u32 %v899, 2147483648
        %v1123 = vor.u32 1.1754944e-38, %v1122
        %v1124 = vsel %vm1121, %v1123, %v1119
        %v1125 = vmul.f32 1.0, %v1124
        %v1126 = vrcp.pop %v900
        %v1127 = vmul.f32 %v900, %v1126
        %v1128 = vsub.f32 1.0, %v1127
        %v1129 = vmul.f32 %v1126, %v1128
        %v1130 = vadd.f32 %v1126, %v1129
        %vm1131 = vweird.f32 %v900
        %vm1132 = vweird.f32 %v1126
        %vm1133 = vmor %vm1131, %vm1132
        %v1134 = vsel %vm1133, %v1126, %v1130
        %v1135 = vand.u32 2147483647, %v900
        %vm1136 = vcmp.eq.f32.partialorder %v1135, 8.507059e+37
        %v1137 = vand.u32 %v900, 2147483648
        %v1138 = vor.u32 1.1754944e-38, %v1137
        %v1139 = vsel %vm1136, %v1138, %v1134
        %v1140 = vmul.f32 1.0, %v1139
        %v1141 = vld [vmem:[%s6] sm:$0x1]
        %v1143 = vperm.slane %v1141, 0
        %v1145 = vadd.f32 %v560, %v1143
        %v1146 = vadd.f32 %v562, %v1143
        %v1147 = vadd.f32 %v565, %v1143
        %v1148 = vadd.f32 %v567, %v1143
        %v1149 = vadd.f32 %v570, %v1143
        %v1150 = vadd.f32 %v572, %v1143
        %v1151 = vadd.f32 %v575, %v1143
        %v1152 = vadd.f32 %v577, %v1143
        %v1153 = vadd.f32 %v580, %v1143
        %v1154 = vadd.f32 %v582, %v1143
        %v1155 = vadd.f32 %v585, %v1143
        %v1156 = vadd.f32 %v587, %v1143
        %v1157 = vadd.f32 %v590, %v1143
        %v1158 = vadd.f32 %v592, %v1143
        %v1159 = vadd.f32 %v595, %v1143
        %v1160 = vadd.f32 %v597, %v1143
        %v1161 = vld [vmem:[%s7] sm:$0x1]
        %v1163 = vperm.slane %v1161, 0
        %v1165 = vadd.f32 %v762, %v1163
        %v1166 = vadd.f32 %v764, %v1163
        %v1167 = vadd.f32 %v767, %v1163
        %v1168 = vadd.f32 %v769, %v1163
        %v1169 = vadd.f32 %v772, %v1163
        %v1170 = vadd.f32 %v774, %v1163
        %v1171 = vadd.f32 %v777, %v1163
        %v1172 = vadd.f32 %v779, %v1163
        %v1173 = vadd.f32 %v782, %v1163
        %v1174 = vadd.f32 %v784, %v1163
        %v1175 = vadd.f32 %v787, %v1163
        %v1176 = vadd.f32 %v789, %v1163
        %v1177 = vadd.f32 %v792, %v1163
        %v1178 = vadd.f32 %v794, %v1163
        %v1179 = vadd.f32 %v797, %v1163
        %v1180 = vadd.f32 %v799, %v1163
        %v1181 = vmul.f32 %v915, %v1165
        %v1182 = vmul.f32 %v930, %v1166
        %v1183 = vmul.f32 %v945, %v1167
        %v1184 = vmul.f32 %v960, %v1168
        %v1185 = vmul.f32 %v975, %v1169
        %v1186 = vmul.f32 %v990, %v1170
        %v1187 = vmul.f32 %v1005, %v1171
        %v1188 = vmul.f32 %v1020, %v1172
        %v1189 = vmul.f32 %v1035, %v1173
        %v1190 = vmul.f32 %v1050, %v1174
        %v1191 = vmul.f32 %v1065, %v1175
        %v1192 = vmul.f32 %v1080, %v1176
        %v1193 = vmul.f32 %v1095, %v1177
        %v1194 = vmul.f32 %v1110, %v1178
        %v1195 = vmul.f32 %v1125, %v1179
        %v1196 = vmul.f32 %v1140, %v1180
        %v1197 = vadd.f32 %v1145, %v1181
        %v1198 = vadd.f32 %v1146, %v1182
        %v1199 = vadd.f32 %v1147, %v1183
        %v1200 = vadd.f32 %v1148, %v1184
        %v1201 = vadd.f32 %v1149, %v1185
        %v1202 = vadd.f32 %v1150, %v1186
        %v1203 = vadd.f32 %v1151, %v1187
        %v1204 = vadd.f32 %v1152, %v1188
        %v1205 = vadd.f32 %v1153, %v1189
        %v1206 = vadd.f32 %v1154, %v1190
        %v1207 = vadd.f32 %v1155, %v1191
        %v1208 = vadd.f32 %v1156, %v1192
        %v1209 = vadd.f32 %v1157, %v1193
        %v1210 = vadd.f32 %v1158, %v1194
        %v1211 = vadd.f32 %v1159, %v1195
        %v1212 = vadd.f32 %v1160, %v1196
        %v1213 = vtanh.pop %v1197
        %v1214 = vtanh.pop %v1198
        %v1215 = vtanh.pop %v1199
        %v1216 = vtanh.pop %v1200
        %v1217 = vtanh.pop %v1201
        %v1218 = vtanh.pop %v1202
        %v1219 = vtanh.pop %v1203
        %v1220 = vtanh.pop %v1204
        %v1221 = vtanh.pop %v1205
        %v1222 = vtanh.pop %v1206
        %v1223 = vtanh.pop %v1207
        %v1224 = vtanh.pop %v1208
        %v1225 = vtanh.pop %v1209
        %v1226 = vtanh.pop %v1210
        %v1227 = vtanh.pop %v1211
        %v1228 = vtanh.pop %v1212
        %v1229 = vsub.f32 %v1213, %v352
        %v1230 = vsub.f32 %v1214, %v353
        %v1231 = vsub.f32 %v1215, %v354
        %v1232 = vsub.f32 %v1216, %v355
        %v1233 = vsub.f32 %v1217, %v356
        %v1234 = vsub.f32 %v1218, %v357
        %v1235 = vsub.f32 %v1219, %v358
        %v1236 = vsub.f32 %v1220, %v359
        %v1237 = vsub.f32 %v1221, %v360
        %v1238 = vsub.f32 %v1222, %v361
        %v1239 = vsub.f32 %v1223, %v362
        %v1240 = vsub.f32 %v1224, %v363
        %v1241 = vsub.f32 %v1225, %v364
        %v1242 = vsub.f32 %v1226, %v365
        %v1243 = vsub.f32 %v1227, %v366
        %v1244 = vsub.f32 %v1228, %v367
        %1246 = vset.pattern.permute.xlu0 0
        %1247 = vperm.xlu0 %1246, %v368
        %v1248 = vpop.permute.xlu0 %1247
        %1251 = vset.pattern.permute.xlu0 0
        %1252 = vperm.xlu0 %1251, %v369
        %v1253 = vpop.permute.xlu0 %1252
        %1256 = vset.pattern.permute.xlu0 0
        %1257 = vperm.xlu0 %1256, %v370
        %v1258 = vpop.permute.xlu0 %1257
        %1261 = vset.pattern.permute.xlu0 0
        %1262 = vperm.xlu0 %1261, %v371
        %v1263 = vpop.permute.xlu0 %1262
        %1266 = vset.pattern.permute.xlu0 0
        %1267 = vperm.xlu0 %1266, %v372
        %v1268 = vpop.permute.xlu0 %1267
        %1271 = vset.pattern.permute.xlu0 0
        %1272 = vperm.xlu0 %1271, %v373
        %v1273 = vpop.permute.xlu0 %1272
        %1276 = vset.pattern.permute.xlu0 0
        %1277 = vperm.xlu0 %1276, %v374
        %v1278 = vpop.permute.xlu0 %1277
        %1281 = vset.pattern.permute.xlu0 0
        %1282 = vperm.xlu0 %1281, %v375
        %v1283 = vpop.permute.xlu0 %1282
        %1286 = vset.pattern.permute.xlu0 0
        %1287 = vperm.xlu0 %1286, %v376
        %v1288 = vpop.permute.xlu0 %1287
        %1291 = vset.pattern.permute.xlu0 0
        %1292 = vperm.xlu0 %1291, %v377
        %v1293 = vpop.permute.xlu0 %1292
        %1296 = vset.pattern.permute.xlu0 0
        %1297 = vperm.xlu0 %1296, %v378
        %v1298 = vpop.permute.xlu0 %1297
        %1301 = vset.pattern.permute.xlu0 0
        %1302 = vperm.xlu0 %1301, %v379
        %v1303 = vpop.permute.xlu0 %1302
        %1306 = vset.pattern.permute.xlu0 0
        %1307 = vperm.xlu0 %1306, %v380
        %v1308 = vpop.permute.xlu0 %1307
        %1311 = vset.pattern.permute.xlu0 0
        %1312 = vperm.xlu0 %1311, %v381
        %v1313 = vpop.permute.xlu0 %1312
        %1316 = vset.pattern.permute.xlu0 0
        %1317 = vperm.xlu0 %1316, %v382
        %v1318 = vpop.permute.xlu0 %1317
        %1321 = vset.pattern.permute.xlu0 0
        %1322 = vperm.xlu0 %1321, %v383
        %v1323 = vpop.permute.xlu0 %1322
        %v1325 = vmul.f32 %v1248, %v1229
        %v1326 = vmul.f32 %v1253, %v1230
        %v1327 = vmul.f32 %v1258, %v1231
        %v1328 = vmul.f32 %v1263, %v1232
        %v1329 = vmul.f32 %v1268, %v1233
        %v1330 = vmul.f32 %v1273, %v1234
        %v1331 = vmul.f32 %v1278, %v1235
        %v1332 = vmul.f32 %v1283, %v1236
        %v1333 = vmul.f32 %v1288, %v1237
        %v1334 = vmul.f32 %v1293, %v1238
        %v1335 = vmul.f32 %v1298, %v1239
        %v1336 = vmul.f32 %v1303, %v1240
        %v1337 = vmul.f32 %v1308, %v1241
        %v1338 = vmul.f32 %v1313, %v1242
        %v1339 = vmul.f32 %v1318, %v1243
        %v1340 = vmul.f32 %v1323, %v1244
        %v1341 = vadd.f32 %v352, %v1325
        %v1342 = vadd.f32 %v353, %v1326
        %v1343 = vadd.f32 %v354, %v1327
        %v1344 = vadd.f32 %v355, %v1328
        %v1345 = vadd.f32 %v356, %v1329
        %v1346 = vadd.f32 %v357, %v1330
        %v1347 = vadd.f32 %v358, %v1331
        %v1348 = vadd.f32 %v359, %v1332
        %v1349 = vadd.f32 %v360, %v1333
        %v1350 = vadd.f32 %v361, %v1334
        %v1351 = vadd.f32 %v362, %v1335
        %v1352 = vadd.f32 %v363, %v1336
        %v1353 = vadd.f32 %v364, %v1337
        %v1354 = vadd.f32 %v365, %v1338
        %v1355 = vadd.f32 %v366, %v1339
        %v1356 = vadd.f32 %v367, %v1340
        %1357 = vst [vmem:[%s331] sm:$0xff] %v1341
        %1358 = vst [vmem:[%s331 + $0x8] sm:$0xff] %v1342
        %1359 = vst [vmem:[%s331 + $0x10] sm:$0xff] %v1343
        %1360 = vst [vmem:[%s331 + $0x18] sm:$0xff] %v1344
        %1361 = vst [vmem:[%s331 + $0x20] sm:$0xff] %v1345
        %1362 = vst [vmem:[%s331 + $0x28] sm:$0xff] %v1346
        %1363 = vst [vmem:[%s331 + $0x30] sm:$0xff] %v1347
        %1364 = vst [vmem:[%s331 + $0x38] sm:$0xff] %v1348
        %1365 = vst [vmem:[%s331 + $0x40] sm:$0xff] %v1349
        %1366 = vst [vmem:[%s331 + $0x48] sm:$0xff] %v1350
        %1367 = vst [vmem:[%s331 + $0x50] sm:$0xff] %v1351
        %1368 = vst [vmem:[%s331 + $0x58] sm:$0xff] %v1352
        %1369 = vst [vmem:[%s331 + $0x60] sm:$0xff] %v1353
        %1370 = vst [vmem:[%s331 + $0x68] sm:$0xff] %v1354
        %1371 = vst [vmem:[%s331 + $0x70] sm:$0xff] %v1355
        %1372 = vst [vmem:[%s331 + $0x78] sm:$0xff] %v1356
        %s1373 = sand.u32 %s213, 1
        %s1374 = scalar_lea.sflag [#allocation3], %s1373
        %s1375 = sand.u32 %s213, 1
        %s1376 = smul.addr %s1375, 128
        %s1377 = scalar_lea.vmem [#allocation2], %s1376
        // Predicated region
        $region53: #{tpu_custom_call.1} parent=51 // pred_check
          %p1378 = pneg %p223
        $region54: #{tpu_custom_call.1} parent=51 // pred_check_branch
          %1380 = sbr.rel (%p1378) target = $region56
        $region55: #{tpu_custom_call.1} parent=51 // pred_region
          %s1381 = smul.u32 16, %s22
          %1383 = vsyncadd %s1374, 0
          %s1384 = smul.addr %s1381, 8
          %s1385 = scalar_lea.hbm %s8, %s1384
          %s1386 = sshll.u32 %s1377, 4
          %s1387 = int_to_ptr.vmem [resolvable:$true] %s1386
          %s1388 = sshll.u32 %s1385, 4
          %s1389 = int_to_ptr.hbm [resolvable:$true] %s1388
          %1394 = dma.vmem_to_hbm [thread:$0]  %s1387, 2048, %s1389, %s1374, 128, 128, 8
        $region56: #{tpu_custom_call.1} parent=51 // pred_fallthru
          _
      $region52: #{tpu_custom_call.1} parent=5 // pred_fallthru
        _
      %p1395 = scmp.le.s32.totalorder 2, %s17
      // Predicated region
      $region57: #{tpu_custom_call.1} parent=5 // pred_check
        %p1396 = pneg %p1395
      $region58: #{tpu_custom_call.1} parent=5 // pred_check_branch
        %1398 = sbr.rel (%p1396) target = $region60
      $region59: #{tpu_custom_call.1} parent=5 // pred_region
        %s1399 = ssub.s32 %s17, 2
        // Predicated region
        $region61: #{tpu_custom_call.1} parent=59 // pred_check
          %p1400 = pneg %p229
        $region62: #{tpu_custom_call.1} parent=59 // pred_check_branch
          %1402 = sbr.rel (%p1400) target = $region64
        $region63: #{tpu_custom_call.1} parent=59 // pred_region
          %s1403 = sand.u32 %s214, 1
          %s1404 = scalar_lea.sflag [#allocation3], %s1403
          %s1405 = sand.u32 %s214, 1
          %s1406 = smul.addr %s1405, 128
          %s1407 = scalar_lea.vmem [#allocation2], %s1406
          %1409 = dma.done %s1404, 2048
        $region64: #{tpu_custom_call.1} parent=59 // pred_fallthru
          _
      $region60: #{tpu_custom_call.1} parent=5 // pred_fallthru
        _
    $region6: #{tpu_custom_call.1} parent=1 // loop_footer
      %s21 = sadd.s32 1, %s17
    $region7: #{tpu_custom_call.1} parent=1 // loop_footer_branch
      %16 = sbr.rel target = $region3
    $region8: #{tpu_custom_call.1} parent=1 // loop_exit
      _
    %1410 = vsyncpa [#allocation3], 1
    %s1411 = scalar_lea.sflag [#allocation3], 1
    %1412 = vsyncpa %s1411, 1

</llo_original>
